<compile_context>
chip_gen: v5e
topology: v5e:2x2
jax: 0.10.0
libtpu: 0.0.40
codegen_flags: <defaults>
</compile_context>

<pallas_src>
import math
from functools import partial

import jax
import jax.numpy as jnp
from jax.experimental import pallas as pl
from jax.experimental.pallas import tpu as pltpu

F32 = jnp.float32
BF16 = jnp.bfloat16
LN_EPS = 1e-12            # HF BERT layer_norm_eps default
_SQRT1_2 = 0.7071067811865476


def _vmem_limit_bytes():
    """~70% of this generation's physical VMEM (v5e/v6e 128 MiB, v7x 64 MiB)."""
    try:
        cap = pltpu.get_tpu_info().vmem_capacity_bytes
    except Exception:
        cap = 64 * 1024 * 1024
    return int(cap * 0.7)


_VMEM_LIMIT = _vmem_limit_bytes()


def _cparams(semantics):
    return pltpu.CompilerParams(dimension_semantics=semantics,
                                vmem_limit_bytes=_VMEM_LIMIT)


def _row_tile(m):
    """Row (sublane-axis) tile: multiple of 8, else fall back to full M."""
    for c in (512, 256, 128, 64, 32, 16, 8):
        if m % c == 0:
            return c
    return m


def _layernorm(h, gamma, beta):
    mu = jnp.mean(h, axis=-1, keepdims=True)
    var = jnp.mean(jnp.square(h - mu), axis=-1, keepdims=True)
    return (h - mu) * jax.lax.rsqrt(var + LN_EPS) * gamma + beta


# ----------------------------- Pallas kernels -----------------------------

def _add_ln_kernel(x_ref, res_ref, g_ref, b_ref, o_ref):
    # LayerNorm(x + residual)  -- embeddings epilogue
    h = x_ref[...].astype(F32) + res_ref[...].astype(F32)
    o_ref[...] = _layernorm(h, g_ref[...], b_ref[...]).astype(o_ref.dtype)


def _encoder_layer_kernel(x_ref, qkv_w_ref, qkv_b_ref,
                          ao_w_ref, ao_b_ref, ao_g_ref, ao_beta_ref,
                          i_w_ref, i_b_ref, o_w_ref, o_b_ref,
                          o_g_ref, o_beta_ref,
                          out_ref, ctx_ref, *, num_heads, head_dim):
    """One full BERT encoder layer for one batch element.

    x_ref block: (1, S, H).  All weights are bf16 and resident across the
    batch grid (constant block index -> fetched once per pallas_call).
    """
    H = num_heads * head_dim
    x_f32 = x_ref[0].astype(F32)                               # (S, H)
    x_bf = x_f32.astype(BF16)

    # --- fused QKV projection; LoRA delta and 1/sqrt(dH) already folded ---
    qkv = jnp.dot(x_bf, qkv_w_ref[...], preferred_element_type=F32)
    qkv = qkv + qkv_b_ref[...]                                 # (S, 3H) f32

    # --- per-head self-attention; write context straight into VMEM scratch
    for h in range(num_heads):
        lo = h * head_dim
        q = qkv[:, lo:lo + head_dim].astype(BF16)
        k = qkv[:, H + lo:H + lo + head_dim].astype(BF16)
        v = qkv[:, 2 * H + lo:2 * H + lo + head_dim].astype(BF16)
        # contract last dims directly (no explicit k.T transpose)
        s = jax.lax.dot_general(q, k, (((1,), (1,)), ((), ())),
                                preferred_element_type=F32)    # (S, S) f32
        m = jnp.max(s, axis=-1, keepdims=True)
        p = jnp.exp(s - m)
        denom = jnp.sum(p, axis=-1, keepdims=True)
        ctx_h = jnp.dot(p.astype(BF16), v, preferred_element_type=F32)
        # normalize the small (S, dH) context, not the (S, S) matrix
        ctx_h = ctx_h * pl.reciprocal(denom, approx=True)
        ctx_ref[:, lo:lo + head_dim] = ctx_h

    # --- attention output projection + residual + LayerNorm ---
    attn = jnp.dot(ctx_ref[...].astype(BF16), ao_w_ref[...],
                   preferred_element_type=F32)
    h1 = _layernorm(attn + ao_b_ref[...] + x_f32,
                    ao_g_ref[...], ao_beta_ref[...])           # (S, H) f32

    # --- fused FFN: dense + exact (erf) GELU + dense + residual + LN ---
    inter = jnp.dot(h1.astype(BF16), i_w_ref[...], preferred_element_type=F32)
    inter = inter + i_b_ref[...]
    inter = 0.5 * inter * (1.0 + jax.lax.erf(inter * _SQRT1_2))
    ffn = jnp.dot(inter.astype(BF16), o_w_ref[...], preferred_element_type=F32)
    h2 = _layernorm(ffn + o_b_ref[...] + h1, o_g_ref[...], o_beta_ref[...])

    out_ref[0] = h2.astype(out_ref.dtype)


def _meanpool_proj_kernel(x_ref, w_ref, b_ref, o_ref):
    # mean over the sequence axis, then classification head
    pooled = jnp.mean(x_ref[...].astype(F32), axis=1)          # (tb, H)
    y = jnp.dot(pooled.astype(BF16), w_ref[...], preferred_element_type=F32)
    o_ref[...] = (y + b_ref[...]).astype(o_ref.dtype)


# --------------------------- pallas_call wrappers --------------------------

def add_layernorm(x2d, res2d, gamma_row, beta_row):
    """LayerNorm(x + residual); gridded over rows (full hidden per block)."""
    M, H = x2d.shape
    tm = _row_tile(M)
    row = pl.BlockSpec((tm, H), lambda i: (i, 0))
    vec = pl.BlockSpec((1, H), lambda i: (0, 0))
    return pl.pallas_call(
        _add_ln_kernel,
        out_shape=jax.ShapeDtypeStruct((M, H), x2d.dtype),
        grid=(M // tm,),
        in_specs=[row, row, vec, vec],
        out_specs=row,
        compiler_params=_cparams(("parallel",)),
    )(x2d, res2d, gamma_row, beta_row)


def encoder_layer(hidden3d, lp, num_heads, head_dim):
    """One fused BERT encoder layer, gridded over the batch axis."""
    B, S, H = hidden3d.shape
    I = lp["i_w"].shape[1]

    def full(shape):
        return pl.BlockSpec(shape, lambda b, _s=shape: (0,) * len(_s))

    return pl.pallas_call(
        partial(_encoder_layer_kernel, num_heads=num_heads, head_dim=head_dim),
        out_shape=jax.ShapeDtypeStruct((B, S, H), hidden3d.dtype),
        grid=(B,),
        in_specs=[
            pl.BlockSpec((1, S, H), lambda b: (b, 0, 0)),   # activations
            full((H, 3 * H)), full((1, 3 * H)),             # qkv (resident)
            full((H, H)), full((1, H)),                     # attn out dense
            full((1, H)), full((1, H)),                     # attn out LN
            full((H, I)), full((1, I)),                     # intermediate
            full((I, H)), full((1, H)),                     # output dense
            full((1, H)), full((1, H)),                     # output LN
        ],
        out_specs=pl.BlockSpec((1, S, H), lambda b: (b, 0, 0)),
        scratch_shapes=[pltpu.VMEM((S, H), F32)],           # per-head context
        compiler_params=_cparams(("parallel",)),
    )(hidden3d, lp["qkv_w"], lp["qkv_b"],
      lp["ao_w"], lp["ao_b"], lp["ao_ln_g"], lp["ao_ln_b"],
      lp["i_w"], lp["i_b"], lp["o_w"], lp["o_b"],
      lp["o_ln_g"], lp["o_ln_b"])


def meanpool_proj(x3d, w_io, b_row):
    """proj(x.mean(dim=1)); gridded over the batch axis."""
    B, S, H = x3d.shape
    C = w_io.shape[1]
    tb = _row_tile(B)
    return pl.pallas_call(
        _meanpool_proj_kernel,
        out_shape=jax.ShapeDtypeStruct((B, C), F32),
        grid=(B // tb,),
        in_specs=[
            pl.BlockSpec((tb, S, H), lambda i: (i, 0, 0)),
            pl.BlockSpec((H, C), lambda i: (0, 0)),
            pl.BlockSpec((1, C), lambda i: (0, 0)),
        ],
        out_specs=pl.BlockSpec((tb, C), lambda i: (i, 0)),
        compiler_params=_cparams(("parallel",)),
    )(x3d, w_io, b_row)


# ------------------------------ model forward ------------------------------

def prepare_params(raw):
    """One-time prep: fold LoRA + softmax scale into weights, pack QKV, bf16."""
    cfg = raw["config"]
    scale = 1.0 / math.sqrt(cfg["head_dim"])
    layers = []
    for lp in raw["layers"]:
        # exact for the forward pass: x@W + (x@Wa)@Wb == x@(W + Wa@Wb)
        q_w_eff = (lp["q_w"] + jnp.dot(lp["q_wa"], lp["q_wb"])) * scale
        v_w_eff = lp["v_w"] + jnp.dot(lp["v_wa"], lp["v_wb"])
        qkv_w = jnp.concatenate([q_w_eff, lp["k_w"], v_w_eff], axis=1)
        qkv_b = jnp.concatenate([lp["q_b"] * scale, lp["k_b"], lp["v_b"]], axis=1)
        layers.append(dict(
            qkv_w=qkv_w.astype(BF16), qkv_b=qkv_b.astype(F32),
            ao_w=lp["ao_w"].astype(BF16), ao_b=lp["ao_b"],
            ao_ln_g=lp["ao_ln_g"], ao_ln_b=lp["ao_ln_b"],
            i_w=lp["i_w"].astype(BF16), i_b=lp["i_b"],
            o_w=lp["o_w"].astype(BF16), o_b=lp["o_b"],
            o_ln_g=lp["o_ln_g"], o_ln_b=lp["o_ln_b"],
        ))
    return {
        "config": cfg,
        "embeddings": raw["embeddings"],
        "layers": layers,
        "proj_w": raw["proj_w"].astype(BF16),
        "proj_b": raw["proj_b"],
    }


def bert_lora_forward(params, inputs_embeds):
    """LoRA_bert.forward: proj(bert(inputs_embeds).last_hidden_state.mean(1))."""
    B, S, H = inputs_embeds.shape
    cfg = params["config"]
    nH, dH = cfg["num_heads"], cfg["head_dim"]
    M = B * S

    # --- embeddings (inputs_embeds path): add pos + token_type, LayerNorm ---
    emb = params["embeddings"]
    added = jnp.broadcast_to(
        emb["position"][:S][None, :, :] + emb["token_type"][0][None, None, :],
        (B, S, H),
    ).reshape(M, H)
    hidden = add_layernorm(inputs_embeds.reshape(M, H).astype(F32),
                           added.astype(F32), emb["ln_g"], emb["ln_b"])
    hidden = hidden.reshape(B, S, H)

    # --- encoder layers: one fused Pallas kernel per layer ---
    for lp in params["layers"]:
        hidden = encoder_layer(hidden, lp, nH, dH)

    # --- mean-pool over sequence + classification head (fused) ---
    return meanpool_proj(hidden, params["proj_w"], params["proj_b"])


# --------------------------- parameter construction -------------------------

def init_params(key, *, hidden=32, num_layers=2, num_heads=2, intermediate=64,
                r=4, num_classes=5, max_pos=64):
    assert hidden % num_heads == 0
    head_dim = hidden // num_heads
    keys = iter(jax.random.split(key, 8 + 32 * num_layers))

    def dense(k, fan_in, fan_out):  # weight stored [in, out], BERT-style init
        return (jax.random.normal(k, (fan_in, fan_out), F32) * 0.02,
                jnp.zeros((1, fan_out), F32))

    emb = {
        "position": jax.random.normal(next(keys), (max_pos, hidden), F32) * 0.02,
        "token_type": jax.random.normal(next(keys), (2, hidden), F32) * 0.02,
        "ln_g": jnp.ones((1, hidden), F32),
        "ln_b": jnp.zeros((1, hidden), F32),
    }

    layers = []
    bound = 1.0 / math.sqrt(hidden)  # kaiming_uniform_(a=sqrt(5)), fan_in=hidden
    for _ in range(num_layers):
        q_w, q_b = dense(next(keys), hidden, hidden)
        k_w, k_b = dense(next(keys), hidden, hidden)
        v_w, v_b = dense(next(keys), hidden, hidden)
        ao_w, ao_b = dense(next(keys), hidden, hidden)
        i_w, i_b = dense(next(keys), hidden, intermediate)
        o_w, o_b = dense(next(keys), intermediate, hidden)
        # LoRA A: kaiming-uniform-like; LoRA B: reset_parameters() zeros these,
        # but we use small non-zero values so the LoRA path is exercised.
        q_wa = jax.random.uniform(next(keys), (hidden, r), F32, -bound, bound)
        q_wb = jax.random.normal(next(keys), (r, hidden), F32) * 0.01
        v_wa = jax.random.uniform(next(keys), (hidden, r), F32, -bound, bound)
        v_wb = jax.random.normal(next(keys), (r, hidden), F32) * 0.01
        layers.append(dict(
            q_w=q_w, q_b=q_b, q_wa=q_wa, q_wb=q_wb,
            k_w=k_w, k_b=k_b,
            v_w=v_w, v_b=v_b, v_wa=v_wa, v_wb=v_wb,
            ao_w=ao_w, ao_b=ao_b,
            ao_ln_g=jnp.ones((1, hidden), F32), ao_ln_b=jnp.zeros((1, hidden), F32),
            i_w=i_w, i_b=i_b, o_w=o_w, o_b=o_b,
            o_ln_g=jnp.ones((1, hidden), F32), o_ln_b=jnp.zeros((1, hidden), F32),
        ))

    proj_w, proj_b = dense(next(keys), hidden, num_classes)
    return {
        "config": {"num_heads": num_heads, "head_dim": head_dim},
        "embeddings": emb,
        "layers": layers,
        "proj_w": proj_w,
        "proj_b": proj_b,
    }


# ----------------------------------- main -----------------------------------

if __name__ == "__main__":
    key = jax.random.PRNGKey(0)
    pkey, xkey = jax.random.split(key)

    B, S, H = 2, 8, 32
    raw_params = init_params(pkey, hidden=H, num_layers=2, num_heads=2,
                             intermediate=64, r=4, num_classes=5)
    params = prepare_params(raw_params)   # LoRA/scale folding done ONCE here
    inputs_embeds = jax.random.normal(xkey, (B, S, H), dtype=F32)

    logits = bert_lora_forward(params, inputs_embeds)
    jax.block_until_ready(logits)
    assert logits.shape == (B, 5) and logits.dtype == F32
    print("KERNEL_OK")
</pallas_src>

<mosaic_0001>
module attributes {stable_mosaic.version = 11 : i64} {
  func.func @_add_ln_kernel(%arg0: i32, %arg1: memref<16x32xf32, #tpu.memory_space<vmem>>, %arg2: memref<16x32xf32, #tpu.memory_space<vmem>>, %arg3: memref<1x32xf32, #tpu.memory_space<vmem>>, %arg4: memref<1x32xf32, #tpu.memory_space<vmem>>, %arg5: memref<16x32xf32, #tpu.memory_space<vmem>>) attributes {dimension_semantics = [#tpu.dimension_semantics<parallel>], iteration_bounds = array<i64: 1>, scalar_prefetch = 0 : i64, scratch_operands = 0 : i64, tpu.core_type = #tpu.core_type<tc>, window_params = [{transform_indices = @transform_0, window_bounds = array<i64: 16, 32>}, {transform_indices = @transform_1, window_bounds = array<i64: 16, 32>}, {pipeline_mode = #tpu.pipeline_mode<synchronous>, transform_indices = @transform_2, window_bounds = array<i64: 1, 32>}, {pipeline_mode = #tpu.pipeline_mode<synchronous>, transform_indices = @transform_3, window_bounds = array<i64: 1, 32>}, {transform_indices = @transform_4, window_bounds = array<i64: 16, 32>}]} {
    %c0 = arith.constant 0 : index
    %c0_0 = arith.constant 0 : index
    %0 = vector.load %arg1[%c0, %c0_0] : memref<16x32xf32, #tpu.memory_space<vmem>>, vector<16x32xf32>
    %c0_1 = arith.constant 0 : index
    %c0_2 = arith.constant 0 : index
    %1 = vector.load %arg2[%c0_1, %c0_2] : memref<16x32xf32, #tpu.memory_space<vmem>>, vector<16x32xf32>
    %2 = arith.addf %0, %1 : vector<16x32xf32>
    %c0_3 = arith.constant 0 : index
    %c0_4 = arith.constant 0 : index
    %3 = vector.load %arg3[%c0_3, %c0_4] : memref<1x32xf32, #tpu.memory_space<vmem>>, vector<1x32xf32>
    %c0_5 = arith.constant 0 : index
    %c0_6 = arith.constant 0 : index
    %4 = vector.load %arg4[%c0_5, %c0_6] : memref<1x32xf32, #tpu.memory_space<vmem>>, vector<1x32xf32>
    %cst = arith.constant dense<0.000000e+00> : vector<16xf32>
    %5 = vector.multi_reduction <add>, %2, %cst [1] : vector<16x32xf32> to vector<16xf32>
    %6 = vector.shape_cast %5 : vector<16xf32> to vector<16x1xf32>
    %cst_7 = arith.constant 3.200000e+01 : f32
    %7 = vector.broadcast %cst_7 : f32 to vector<16x1xf32>
    %8 = arith.divf %6, %7 : vector<16x1xf32>
    %9 = vector.broadcast %8 : vector<16x1xf32> to vector<16x32xf32>
    %10 = arith.subf %2, %9 : vector<16x32xf32>
    %11 = arith.mulf %10, %10 : vector<16x32xf32>
    %cst_8 = arith.constant dense<0.000000e+00> : vector<16xf32>
    %12 = vector.multi_reduction <add>, %11, %cst_8 [1] : vector<16x32xf32> to vector<16xf32>
    %13 = vector.shape_cast %12 : vector<16xf32> to vector<16x1xf32>
    %cst_9 = arith.constant 3.200000e+01 : f32
    %14 = vector.broadcast %cst_9 : f32 to vector<16x1xf32>
    %15 = arith.divf %13, %14 : vector<16x1xf32>
    %16 = vector.broadcast %8 : vector<16x1xf32> to vector<16x32xf32>
    %17 = arith.subf %2, %16 : vector<16x32xf32>
    %cst_10 = arith.constant 9.99999996E-13 : f32
    %18 = vector.broadcast %cst_10 : f32 to vector<16x1xf32>
    %19 = arith.addf %15, %18 : vector<16x1xf32>
    %20 = math.rsqrt %19 : vector<16x1xf32>
    %21 = vector.broadcast %20 : vector<16x1xf32> to vector<16x32xf32>
    %22 = arith.mulf %17, %21 : vector<16x32xf32>
    %23 = vector.broadcast %3 : vector<1x32xf32> to vector<16x32xf32>
    %24 = arith.mulf %22, %23 : vector<16x32xf32>
    %25 = vector.broadcast %4 : vector<1x32xf32> to vector<16x32xf32>
    %26 = arith.addf %24, %25 : vector<16x32xf32>
    %c0_11 = arith.constant 0 : index
    %c0_12 = arith.constant 0 : index
    %27 = vector.load %arg5[%c0_11, %c0_12] : memref<16x32xf32, #tpu.memory_space<vmem>>, vector<16x32xf32>
    tpu.vector_store %arg5[%c0_11, %c0_12], %26 {strides = array<i32>} : memref<16x32xf32, #tpu.memory_space<vmem>>, vector<16x32xf32>,
    return
  }
  func.func @transform_0(%arg0: i32) -> (i32, i32) {
    %c0_i32 = arith.constant 0 : i32
    %c0_i32_0 = arith.constant 0 : i32
    return %arg0, %c0_i32 : i32, i32
  }
  func.func @transform_1(%arg0: i32) -> (i32, i32) {
    %c0_i32 = arith.constant 0 : i32
    %c0_i32_0 = arith.constant 0 : i32
    return %arg0, %c0_i32 : i32, i32
  }
  func.func @transform_2(%arg0: i32) -> (i32, i32) {
    %c0_i32 = arith.constant 0 : i32
    %c0_i32_0 = arith.constant 0 : i32
    %c0_i32_1 = arith.constant 0 : i32
    return %c0_i32, %c0_i32_0 : i32, i32
  }
  func.func @transform_3(%arg0: i32) -> (i32, i32) {
    %c0_i32 = arith.constant 0 : i32
    %c0_i32_0 = arith.constant 0 : i32
    %c0_i32_1 = arith.constant 0 : i32
    return %c0_i32, %c0_i32_0 : i32, i32
  }
  func.func @transform_4(%arg0: i32) -> (i32, i32) {
    %c0_i32 = arith.constant 0 : i32
    %c0_i32_0 = arith.constant 0 : i32
    return %arg0, %c0_i32 : i32, i32
  }
}

</mosaic_0001>

<llo_original>
// kernel: tpu_custom_call.1
$region0: #{tpu_custom_call.1}
  #allocation0 [shape = 'u32[]', space=smem, size = 0x4, offset = 0x4, fixed_abs, tag = 'smem constant byte address 0x4 - core index']
  #allocation1 [shape = 'u32[72,128]{1,0:T(1,128)}', space=vmem, size = 0x9000, scoped, tag = 'internal scratch']
  %s0 = inlined_call_operand.hbm [shape: f32[16,32], index: 0, kind: input, shape index: {}]
  %s1 = inlined_call_operand.hbm [shape: f32[16,32], index: 1, kind: input, shape index: {}]
  %s2 = inlined_call_operand.vmem [shape: f32[1,32], index: 2, kind: input, shape index: {}]
  %s3 = inlined_call_operand.vmem [shape: f32[1,32], index: 3, kind: input, shape index: {}]
  %s4 = inlined_call_operand.hbm [shape: f32[16,32], index: 4, kind: output, shape index: {}]
  %s5 = sld [smem:[#allocation0]]
  $region34: #{tpu_custom_call.1} parent=0
    _
  %s7 = ssub.s32 1, %s5
  %s8 = scalar_select 0, %s7, %s5
  $region1: #{tpu_custom_call.1} parent=0
    #allocation2 [shape = 'u8[8192]{0}', space=vmem, size = 0x2000, scoped, tag = 'input window, operand 0, single buffered']
    #allocation3 [shape = 's32[1]{0}', space=sflag, size = 0x4, scoped, tag = 'scoped memory for tpu_custom_call.1']
    #allocation4 [shape = 's32[1]{0}', space=sflag, size = 0x4, scoped, tag = 'scoped memory for tpu_custom_call.1']
    #allocation5 [shape = 'u8[8192]{0}', space=vmem, size = 0x2000, scoped, tag = 'input window, operand 1, single buffered']
    #allocation6 [shape = 's32[1]{0}', space=sflag, size = 0x4, scoped, tag = 'scoped memory for tpu_custom_call.1']
    #allocation7 [shape = 'u8[8192]{0}', space=vmem, size = 0x2000, scoped, tag = 'output window, operand 0, single buffered']
    %9 = vsyncpa [#allocation3], 0
    %10 = vsyncpa [#allocation6], 0
    %11 = vsyncpa [#allocation4], 0
    // Predicated region
    $region2: #{tpu_custom_call.1} parent=1 // pred_check
      _
    $region3: #{tpu_custom_call.1} parent=1 // pred_check_branch
      %13 = sbr.rel (0) target = $region5
    $region4: #{tpu_custom_call.1} parent=1 // pred_region
      %15 = vsyncadd [#allocation3], 0
      %s16 = sshll.u32 %s0, 4
      %s17 = int_to_ptr.hbm [resolvable:$true] %s16
      %s18 = sshll.u32 [#allocation2], 4
      %s19 = int_to_ptr.vmem [resolvable:$true] %s18
      %24 = dma.hbm_to_vmem [thread:$0]  %s17, 256, %s19, [#allocation3], 128, 128, 8
    $region5: #{tpu_custom_call.1} parent=1 // pred_fallthru
      _
    // Predicated region
    $region6: #{tpu_custom_call.1} parent=1 // pred_check
      _
    $region7: #{tpu_custom_call.1} parent=1 // pred_check_branch
      %26 = sbr.rel (0) target = $region9
    $region8: #{tpu_custom_call.1} parent=1 // pred_region
      %28 = vsyncadd [#allocation6], 0
      %s29 = sshll.u32 %s1, 4
      %s30 = int_to_ptr.hbm [resolvable:$true] %s29
      %s31 = sshll.u32 [#allocation5], 4
      %s32 = int_to_ptr.vmem [resolvable:$true] %s31
      %37 = dma.hbm_to_vmem [thread:$0]  %s30, 256, %s32, [#allocation6], 128, 128, 8
    $region9: #{tpu_custom_call.1} parent=1 // pred_fallthru
      _
    // Predicated region
    $region10: #{tpu_custom_call.1} parent=1 // pred_check
      _
    $region11: #{tpu_custom_call.1} parent=1 // pred_check_branch
      %39 = sbr.rel (0) target = $region13
    $region12: #{tpu_custom_call.1} parent=1 // pred_region
      _
    $region13: #{tpu_custom_call.1} parent=1 // pred_fallthru
      _
    // Predicated region
    $region14: #{tpu_custom_call.1} parent=1 // pred_check
      _
    $region15: #{tpu_custom_call.1} parent=1 // pred_check_branch
      %41 = sbr.rel (0) target = $region17
    $region16: #{tpu_custom_call.1} parent=1 // pred_region
      _
    $region17: #{tpu_custom_call.1} parent=1 // pred_fallthru
      _
    // Predicated region
    $region18: #{tpu_custom_call.1} parent=1 // pred_check
      _
    $region19: #{tpu_custom_call.1} parent=1 // pred_check_branch
      %43 = sbr.rel (0) target = $region21
    $region20: #{tpu_custom_call.1} parent=1 // pred_region
      %45 = dma.done [#allocation3], 256
    $region21: #{tpu_custom_call.1} parent=1 // pred_fallthru
      _
    // Predicated region
    $region22: #{tpu_custom_call.1} parent=1 // pred_check
      _
    $region23: #{tpu_custom_call.1} parent=1 // pred_check_branch
      %47 = sbr.rel (0) target = $region25
    $region24: #{tpu_custom_call.1} parent=1 // pred_region
      %49 = dma.done [#allocation6], 256
    $region25: #{tpu_custom_call.1} parent=1 // pred_fallthru
      _
    %v50 = vld [vmem:[#allocation2] sm:$0xff]
    %v51 = vld [vmem:[#allocation2 + $0x8] sm:$0xff]
    %v52 = vld [vmem:[#allocation5] sm:$0xff]
    %v53 = vld [vmem:[#allocation5 + $0x8] sm:$0xff]
    %v54 = vadd.f32 %v50, %v52
    %v55 = vadd.f32 %v51, %v53
    %v56 = vld [vmem:[%s2] sm:$0x1]
    %v57 = vld [vmem:[%s3] sm:$0x1]
    %vm58 = vcmask 261120
    %v59 = vsel %vm58, %v54, 0.0
    %60 = vadd.xlane.f32.xlu0 %v59
    %v61 = vpop.xlane.xlu0 %60
    %v62 = vsel %vm58, %v55, 0.0
    %63 = vadd.xlane.f32.xlu0 %v62
    %v64 = vpop.xlane.xlu0 %63
    %v65 = vrcp.pop 32.0
    %v66 = vmul.f32 32.0, %v65
    %v67 = vsub.f32 1.0, %v66
    %v68 = vmul.f32 %v65, %v67
    %v69 = vadd.f32 %v65, %v68
    %vm70 = vweird.f32 %v65
    %v71 = vsel %vm70, %v65, %v69
    %v72 = vmul.f32 %v61, %v71
    %v73 = vmul.f32 %v64, %v71
    %v74 = vsub.f32 %v54, %v72
    %v75 = vsub.f32 %v55, %v73
    %v76 = vmul.f32 %v74, %v74
    %v77 = vmul.f32 %v75, %v75
    %v78 = vsel %vm58, %v76, 0.0
    %79 = vadd.xlane.f32.xlu0 %v78
    %v80 = vpop.xlane.xlu0 %79
    %v81 = vsel %vm58, %v77, 0.0
    %82 = vadd.xlane.f32.xlu0 %v81
    %v83 = vpop.xlane.xlu0 %82
    %v84 = vmul.f32 %v80, %v71
    %v85 = vmul.f32 %v83, %v71
    %v86 = vadd.f32 %v84, 1e-12
    %v87 = vadd.f32 %v85, 1e-12
    %v88 = vrsqrt.pop %v86
    %v89 = vmul.f32 %v88, %v86
    %v90 = vmul.f32 %v89, %v88
    %v91 = vmul.f32 0.5, %v90
    %v92 = vsub.f32 1.5, %v91
    %v93 = vmul.f32 %v88, %v92
    %vm94 = vweird.f32 %v86
    %vm95 = vweird.f32 %v88
    %vm96 = vmor %vm94, %vm95
    %v97 = vsel %vm96, %v88, %v93
    %v98 = vrsqrt.pop %v87
    %v99 = vmul.f32 %v98, %v87
    %v100 = vmul.f32 %v99, %v98
    %v101 = vmul.f32 0.5, %v100
    %v102 = vsub.f32 1.5, %v101
    %v103 = vmul.f32 %v98, %v102
    %vm104 = vweird.f32 %v87
    %vm105 = vweird.f32 %v98
    %vm106 = vmor %vm104, %vm105
    %v107 = vsel %vm106, %v98, %v103
    %v108 = vmul.f32 %v74, %v97
    %v109 = vmul.f32 %v75, %v107
    %v111 = vperm.slane %v56, 0
    %v113 = vmul.f32 %v108, %v111
    %v114 = vmul.f32 %v109, %v111
    %v116 = vperm.slane %v57, 0
    %v118 = vadd.f32 %v113, %v116
    %v119 = vadd.f32 %v114, %v116
    %120 = vst.msk [vmem:[#allocation7] sm:$0xff] %vm58, %v118
    %121 = vst.msk [vmem:[#allocation7 + $0x8] sm:$0xff] %vm58, %v119
    // Predicated region
    $region26: #{tpu_custom_call.1} parent=1 // pred_check
      _
    $region27: #{tpu_custom_call.1} parent=1 // pred_check_branch
      %123 = sbr.rel (0) target = $region29
    $region28: #{tpu_custom_call.1} parent=1 // pred_region
      %125 = vsyncadd [#allocation4], 0
      %s126 = sshll.u32 [#allocation7], 4
      %s127 = int_to_ptr.vmem [resolvable:$true] %s126
      %s128 = sshll.u32 %s4, 4
      %s129 = int_to_ptr.hbm [resolvable:$true] %s128
      %134 = dma.vmem_to_hbm [thread:$0]  %s127, 256, %s129, [#allocation4], 128, 128, 8
    $region29: #{tpu_custom_call.1} parent=1 // pred_fallthru
      _
    // Predicated region
    $region30: #{tpu_custom_call.1} parent=1 // pred_check
      _
    $region31: #{tpu_custom_call.1} parent=1 // pred_check_branch
      %136 = sbr.rel (0) target = $region33
    $region32: #{tpu_custom_call.1} parent=1 // pred_region
      %138 = dma.done [#allocation4], 256
    $region33: #{tpu_custom_call.1} parent=1 // pred_fallthru
      _
    %139 = vsyncpa [#allocation3], 1
    %140 = vsyncpa [#allocation6], 1
    %141 = vsyncpa [#allocation4], 1

</llo_original>
